<compile_context>
chip_gen: v7x
topology: tpu7x:2x2x1
jax: 0.10.0
libtpu: 0.0.40
codegen_flags: <defaults>
</compile_context>

<pallas_src>
from typing import NamedTuple

import jax
import jax.numpy as jnp
from jax.experimental import pallas as pl
from jax.experimental.pallas import tpu as pltpu


# ----------------------------- helpers ------------------------------------ #

def _round_up(x, m):
    return (x + m - 1) // m * m


def _sublane_pack(dtype):
    # f32 -> 8, bf16/f16 -> 16, int8/fp8 -> 32 rows per packed sublane group.
    bits = jnp.dtype(dtype).itemsize * 8
    return max(8, 256 // bits)


def _pick_tile(extent, granule, cap):
    """Tile size (multiple of `granule`, <= cap): minimize padded extent first
    (bound pad waste), then minimize number of tiles (prefer large tiles)."""
    padded_min = _round_up(extent, granule)
    if padded_min <= cap:
        return padded_min
    best_key, best_t = None, granule
    t = granule
    while t <= cap:
        padded = _round_up(padded_min, t)
        key = (padded, padded // t)
        if best_key is None or key < best_key:
            best_key, best_t = key, t
        t += granule
    return best_t


def _vmem_budget_bytes():
    """~70% of this chip's VMEM; fallback is safe even on v7x (64 MiB)."""
    try:
        cap = getattr(pltpu.get_tpu_info(), "vmem_capacity_bytes", None)
        if cap:
            return int(cap * 0.70)
    except Exception:
        pass
    return 40 << 20


def _num_tensorcores():
    """Best-effort TensorCore count (2 on v7x). Falls back to 1 (safe)."""
    try:
        info = pltpu.get_tpu_info()
        for name in ("num_cores", "core_count", "tensorcore_count",
                     "cores_per_chip"):
            v = getattr(info, name, None)
            if isinstance(v, int) and v > 0:
                return v
    except Exception:
        pass
    try:
        v = getattr(jax.devices()[0], "num_cores", None)
        if isinstance(v, int) and v > 0:
            return v
    except Exception:
        pass
    return 1


# ------------------------------ kernel ------------------------------------ #

def gated_linear_kernel(x_ref, w_ref, b_ref, o_ref, acc_ref):
    # Fold the bias into the accumulator init on the first K step.
    @pl.when(pl.program_id(2) == 0)
    def _init():
        acc_ref[...] = jnp.broadcast_to(b_ref[...], acc_ref.shape)

    # Single fused GEMM per step: (tm, tk) x (tk, 2*tn) -> (tm, 2*tn) in f32.
    acc_ref[...] += jnp.dot(x_ref[...], w_ref[...],
                            preferred_element_type=jnp.float32)

    # Epilogue on the final K step: split lin/gate halves, sigmoid-gate, store.
    @pl.when(pl.program_id(2) == pl.num_programs(2) - 1)
    def _finalize():
        tn = o_ref.shape[1]
        acc = acc_ref[...]
        o_ref[...] = (acc[:, :tn] * jax.nn.sigmoid(acc[:, tn:])).astype(o_ref.dtype)


# --------------------------- host-side API --------------------------------- #

class GatedLinearParams(NamedTuple):
    w_fused: jax.Array   # (Kp, nj * 2 * tn), tile j columns = [lin_j | gate_j]
    b_fused: jax.Array   # (1,  nj * 2 * tn), float32
    in_features: int     # K (unpadded)
    out_features: int    # N (unpadded)
    tn: int
    tk: int


def prepare_gated_linear(w_lin, b_lin, w_gate, b_gate, *,
                         tn_max=512, tk_max=2048, compute_dtype=None):
    """One-time weight re-layout. Weights are (in_features, out_features) = (K, N),
    i.e. the transpose of nn.Linear.weight."""
    K, N = w_lin.shape
    tn = _pick_tile(N, 128, tn_max)
    tk = _pick_tile(K, 128, tk_max)
    Kp, Np = _round_up(K, tk), _round_up(N, tn)
    nj = Np // tn

    wdt = jnp.dtype(compute_dtype) if compute_dtype is not None else w_lin.dtype
    wl = w_lin.astype(wdt)
    wg = w_gate.astype(wdt)
    if (Kp, Np) != (K, N):
        wl = jnp.zeros((Kp, Np), wdt).at[:K, :N].set(wl)
        wg = jnp.zeros((Kp, Np), wdt).at[:K, :N].set(wg)
    w_fused = jnp.stack(
        [wl.reshape(Kp, nj, tn), wg.reshape(Kp, nj, tn)], axis=2
    ).reshape(Kp, nj * 2 * tn)

    bl = b_lin.astype(jnp.float32)
    bg = b_gate.astype(jnp.float32)
    if Np != N:
        bl = jnp.zeros((Np,), jnp.float32).at[:N].set(bl)
        bg = jnp.zeros((Np,), jnp.float32).at[:N].set(bg)
    b_fused = jnp.stack(
        [bl.reshape(nj, tn), bg.reshape(nj, tn)], axis=1
    ).reshape(1, nj * 2 * tn)

    return GatedLinearParams(w_fused, b_fused, K, N, tn, tk)


def gated_linear_apply(x, params, *, tm_max=512, force_pallas=False):
    """x: (M, K). Returns (M, N) = linear(x) * sigmoid(gate(x))."""
    M, K = x.shape
    assert K == params.in_features, "in_features mismatch"
    N, tn, tk = params.out_features, params.tn, params.tk
    out_dtype = x.dtype
    wdt = params.w_fused.dtype
    Kp = params.w_fused.shape[0]
    Np = _round_up(N, tn)
    nj = Np // tn

    # Tiny-shape fallback: padding/pipeline overhead dominates the kernel.
    if not force_pallas and (2 * M * K * 2 * N) < (1 << 22):
        xc = x.astype(wdt)
        if Kp != K:
            xc = jnp.zeros((M, Kp), wdt).at[:, :K].set(xc)
        acc = jnp.dot(xc, params.w_fused,
                      preferred_element_type=jnp.float32) + params.b_fused
        acc = acc.reshape(M, nj, 2, tn)
        out = (acc[:, :, 0, :] * jax.nn.sigmoid(acc[:, :, 1, :])).reshape(M, Np)
        return out[:, :N].astype(out_dtype)

    # Pick tm: minimize pad waste, round to the dtype's sublane packing.
    pack = _sublane_pack(wdt)
    tm = _pick_tile(M, pack, tm_max)
    Mp = _round_up(M, tm)

    x_item = jnp.dtype(wdt).itemsize
    out_item = jnp.dtype(out_dtype).itemsize

    def step_bytes(tm_):
        # double-buffered x / fused-W / bias / out tiles + f32 accumulator
        return (2 * (tm_ * tk * x_item + tk * 2 * tn * x_item
                     + 2 * tn * 4 + tm_ * tn * out_item)
                + tm_ * 2 * tn * 4)

    budget = _vmem_budget_bytes()
    while step_bytes(tm) > budget and tm > pack:
        tm = max(pack, _round_up(tm // 2, pack))
        Mp = _round_up(M, tm)

    # v7x: keep both TensorCores busy if the parallel grid would be 1x1.
    if (_num_tensorcores() >= 2 and Mp // tm == 1 and Np // tn == 1
            and Mp >= 2 * pack):
        tm = max(pack, _round_up((Mp + 1) // 2, pack))
        Mp = _round_up(M, tm)

    # Pad the activation only when needed.
    xc = x.astype(wdt) if x.dtype != wdt else x
    if (M, K) != (Mp, Kp):
        x_p = jnp.zeros((Mp, Kp), wdt).at[:M, :K].set(xc)
    else:
        x_p = xc

    grid = (Mp // tm, Np // tn, Kp // tk)

    vmem_limit = int(min(max(step_bytes(tm) + (4 << 20), 16 << 20), budget))
    vmem_limit = max(vmem_limit, step_bytes(tm) + (1 << 20))

    # Bytes account for re-streaming: W read Mp/tm times, x read Np/tn times.
    cost = pl.CostEstimate(
        flops=2 * Mp * Kp * 2 * Np,
        transcendentals=Mp * Np,
        bytes_accessed=(x_p.size * x_item * (Np // tn)
                        + params.w_fused.size * x_item * (Mp // tm)
                        + params.b_fused.size * 4 * (Mp // tm)
                        + Mp * Np * out_item),
    )

    out_p = pl.pallas_call(
        gated_linear_kernel,
        out_shape=jax.ShapeDtypeStruct((Mp, Np), out_dtype),
        grid_spec=pltpu.PrefetchScalarGridSpec(
            num_scalar_prefetch=0,
            grid=grid,
            in_specs=[
                pl.BlockSpec((tm, tk), lambda i, j, k: (i, k)),        # x
                pl.BlockSpec((tk, 2 * tn), lambda i, j, k: (k, j)),    # fused W
                pl.BlockSpec((1, 2 * tn), lambda i, j, k: (0, j)),     # fused bias (f32)
            ],
            out_specs=pl.BlockSpec((tm, tn), lambda i, j, k: (i, j)),
            scratch_shapes=[pltpu.VMEM((tm, 2 * tn), jnp.float32)],
        ),
        compiler_params=pltpu.CompilerParams(
            dimension_semantics=("parallel", "parallel", "arbitrary"),
            vmem_limit_bytes=vmem_limit,
        ),
        cost_estimate=cost,
    )(x_p, params.w_fused, params.b_fused)

    if (Mp, Np) == (M, N):
        return out_p
    return out_p[:M, :N]


def gated_linear(x, w_lin, b_lin, w_gate, b_gate, **kwargs):
    """One-shot convenience wrapper (re-fuses weights every call; prefer
    prepare_gated_linear + gated_linear_apply in real use)."""
    params = prepare_gated_linear(w_lin, b_lin, w_gate, b_gate)
    return gated_linear_apply(x, params, **kwargs)


# ------------------------------- demo -------------------------------------- #

if __name__ == "__main__":
    def _ref(x, wl, bl, wg, bg):
        return (x @ wl + bl) * jax.nn.sigmoid(x @ wg + bg)

    def _make(key, M, K, N):
        kx, kwl, kbl, kwg, kbg = jax.random.split(key, 5)
        bound = 1.0 / (K ** 0.5)   # nn.Linear-style init, weights stored (K, N)
        wl = jax.random.uniform(kwl, (K, N), minval=-bound, maxval=bound,
                                dtype=jnp.float32)
        bl = jax.random.uniform(kbl, (N,), minval=-bound, maxval=bound,
                                dtype=jnp.float32)
        wg = jax.random.uniform(kwg, (K, N), minval=-bound, maxval=bound,
                                dtype=jnp.float32)
        bg = jax.random.uniform(kbg, (N,), minval=-bound, maxval=bound,
                                dtype=jnp.float32)
        x = jax.random.normal(kx, (M, K), dtype=jnp.float32)
        return x, wl, bl, wg, bg

    key = jax.random.PRNGKey(0)
    k1, k2, k3 = jax.random.split(key, 3)

    # 1) Module-sized shapes (batch=8, in=32, out=32): fallback path + forced kernel.
    x, wl, bl, wg, bg = _make(k1, 8, 32, 32)
    params = prepare_gated_linear(wl, bl, wg, bg)
    ref = _ref(x, wl, bl, wg, bg)
    out_fb = jax.block_until_ready(gated_linear_apply(x, params))
    assert out_fb.shape == (8, 32) and jnp.allclose(out_fb, ref, atol=1e-5, rtol=1e-5)
    out_k = jax.block_until_ready(gated_linear_apply(x, params, force_pallas=True))
    assert out_k.shape == (8, 32) and jnp.allclose(out_k, ref, atol=1e-5, rtol=1e-5)

    # 2) Multi-tile grid (forces M/N/K tiling and K-step accumulation).
    x2, wl2, bl2, wg2, bg2 = _make(k2, 64, 384, 256)
    params2 = prepare_gated_linear(wl2, bl2, wg2, bg2, tn_max=128, tk_max=128)
    out2 = jax.block_until_ready(
        gated_linear_apply(x2, params2, tm_max=32, force_pallas=True))
    ref2 = _ref(x2, wl2, bl2, wg2, bg2)
    assert out2.shape == (64, 256) and jnp.allclose(out2, ref2, atol=1e-4, rtol=1e-4)

    # 3) Unaligned shapes (exercise the zero-padding / slicing paths).
    x3, wl3, bl3, wg3, bg3 = _make(k3, 40, 200, 160)
    params3 = prepare_gated_linear(wl3, bl3, wg3, bg3)
    out3 = jax.block_until_ready(
        gated_linear_apply(x3, params3, force_pallas=True))
    ref3 = _ref(x3, wl3, bl3, wg3, bg3)
    assert out3.shape == (40, 160) and jnp.allclose(out3, ref3, atol=1e-4, rtol=1e-4)

    print("KERNEL_OK")
</pallas_src>

<mosaic_0001>
module attributes {stable_mosaic.version = 11 : i64} {
  func.func @gated_linear_kernel(%arg0: i32, %arg1: i32, %arg2: i32, %arg3: memref<8x128xf32, #tpu.memory_space<vmem>>, %arg4: memref<128x256xf32, #tpu.memory_space<vmem>>, %arg5: memref<1x256xf32, #tpu.memory_space<vmem>>, %arg6: memref<8x128xf32, #tpu.memory_space<vmem>>, %arg7: memref<8x256xf32, #tpu.memory_space<vmem>>) attributes {dimension_semantics = [#tpu.dimension_semantics<parallel>, #tpu.dimension_semantics<parallel>, #tpu.dimension_semantics<arbitrary>], iteration_bounds = array<i64: 1, 1, 1>, scalar_prefetch = 0 : i64, scratch_operands = 1 : i64, tpu.core_type = #tpu.core_type<tc>, window_params = [{transform_indices = @transform_0, window_bounds = array<i64: 8, 128>}, {transform_indices = @transform_1, window_bounds = array<i64: 128, 256>}, {transform_indices = @transform_2, window_bounds = array<i64: 1, 256>}, {transform_indices = @transform_3, window_bounds = array<i64: 8, 128>}]} {
    %c0_i32 = arith.constant 0 : i32
    %0 = arith.cmpi eq, %arg2, %c0_i32 : i32
    %1 = arith.extui %0 : i1 to i32
    %c0_i32_0 = arith.constant 0 : i32
    %2 = arith.cmpi ne, %1, %c0_i32_0 : i32
    scf.if %2 {
      %c0_10 = arith.constant 0 : index
      %c0_11 = arith.constant 0 : index
      %12 = vector.load %arg5[%c0_10, %c0_11] : memref<1x256xf32, #tpu.memory_space<vmem>>, vector<1x256xf32>
      %13 = vector.shape_cast %12 : vector<1x256xf32> to vector<1x256xf32>
      %14 = vector.broadcast %13 : vector<1x256xf32> to vector<8x256xf32>
      %c0_12 = arith.constant 0 : index
      %c0_13 = arith.constant 0 : index
      %15 = vector.load %arg7[%c0_12, %c0_13] : memref<8x256xf32, #tpu.memory_space<vmem>>, vector<8x256xf32>
      tpu.vector_store %arg7[%c0_12, %c0_13], %14 {strides = array<i32>} : memref<8x256xf32, #tpu.memory_space<vmem>>, vector<8x256xf32>,
    } else {
    }
    %c0 = arith.constant 0 : index
    %c0_1 = arith.constant 0 : index
    %3 = vector.load %arg7[%c0, %c0_1] : memref<8x256xf32, #tpu.memory_space<vmem>>, vector<8x256xf32>
    %c0_2 = arith.constant 0 : index
    %c0_3 = arith.constant 0 : index
    %4 = vector.load %arg3[%c0_2, %c0_3] : memref<8x128xf32, #tpu.memory_space<vmem>>, vector<8x128xf32>
    %c0_4 = arith.constant 0 : index
    %c0_5 = arith.constant 0 : index
    %5 = vector.load %arg4[%c0_4, %c0_5] : memref<128x256xf32, #tpu.memory_space<vmem>>, vector<128x256xf32>
    %cst = arith.constant dense<0.000000e+00> : vector<8x256xf32>
    %6 = tpu.matmul %4, %5, %cst {dimension_numbers = #tpu.dot_dimension_numbers<[1], [0], [0], [1], [0, 0, 1, 1], [], []>} : vector<8x128xf32>, vector<128x256xf32>, vector<8x256xf32> -> vector<8x256xf32>
    %7 = arith.addf %3, %6 : vector<8x256xf32>
    %c0_6 = arith.constant 0 : index
    %c0_7 = arith.constant 0 : index
    %8 = vector.load %arg7[%c0_6, %c0_7] : memref<8x256xf32, #tpu.memory_space<vmem>>, vector<8x256xf32>
    tpu.vector_store %arg7[%c0_6, %c0_7], %7 {strides = array<i32>} : memref<8x256xf32, #tpu.memory_space<vmem>>, vector<8x256xf32>,
    %c0_i32_8 = arith.constant 0 : i32
    %9 = arith.cmpi eq, %arg2, %c0_i32_8 : i32
    %10 = arith.extui %9 : i1 to i32
    %c0_i32_9 = arith.constant 0 : i32
    %11 = arith.cmpi ne, %10, %c0_i32_9 : i32
    scf.if %11 {
      %c0_10 = arith.constant 0 : index
      %c0_11 = arith.constant 0 : index
      %12 = vector.load %arg7[%c0_10, %c0_11] : memref<8x256xf32, #tpu.memory_space<vmem>>, vector<8x256xf32>
      %13 = vector.extract_strided_slice %12 {offsets = [0, 0], sizes = [8, 128], strides = [1, 1]} : vector<8x256xf32> to vector<8x128xf32>
      %14 = vector.extract_strided_slice %12 {offsets = [0, 128], sizes = [8, 128], strides = [1, 1]} : vector<8x256xf32> to vector<8x128xf32>
      %15 = arith.negf %14 : vector<8x128xf32>
      %16 = math.exp %15 : vector<8x128xf32>
      %cst_12 = arith.constant 1.000000e+00 : f32
      %17 = vector.broadcast %cst_12 : f32 to vector<8x128xf32>
      %18 = arith.addf %17, %16 : vector<8x128xf32>
      %19 = arith.divf %17, %18 : vector<8x128xf32>
      %20 = arith.mulf %13, %19 : vector<8x128xf32>
      %c0_13 = arith.constant 0 : index
      %c0_14 = arith.constant 0 : index
      %21 = vector.load %arg6[%c0_13, %c0_14] : memref<8x128xf32, #tpu.memory_space<vmem>>, vector<8x128xf32>
      tpu.vector_store %arg6[%c0_13, %c0_14], %20 {strides = array<i32>} : memref<8x128xf32, #tpu.memory_space<vmem>>, vector<8x128xf32>,
    } else {
    }
    return
  }
  func.func @transform_0(%arg0: i32, %arg1: i32, %arg2: i32) -> (i32, i32) {
    %c0_i32 = arith.constant 0 : i32
    return %arg0, %arg2 : i32, i32
  }
  func.func @transform_1(%arg0: i32, %arg1: i32, %arg2: i32) -> (i32, i32) {
    %c0_i32 = arith.constant 0 : i32
    return %arg2, %arg1 : i32, i32
  }
  func.func @transform_2(%arg0: i32, %arg1: i32, %arg2: i32) -> (i32, i32) {
    %c0_i32 = arith.constant 0 : i32
    %c0_i32_0 = arith.constant 0 : i32
    return %c0_i32, %arg1 : i32, i32
  }
  func.func @transform_3(%arg0: i32, %arg1: i32, %arg2: i32) -> (i32, i32) {
    %c0_i32 = arith.constant 0 : i32
    return %arg0, %arg1 : i32, i32
  }
}

</mosaic_0001>

<llo_original>
// kernel: tpu_custom_call.1
$region0: #{tpu_custom_call.1}
  #allocation0 [shape = 'u32[]', space=smem, size = 0x4, offset = 0x4, fixed_abs, tag = 'smem constant byte address 0x4 - core index']
  #allocation1 [shape = 'u32[144,128]{1,0:T(1,128)}', space=vmem, size = 0x12000, scoped, tag = 'internal scratch']
  #allocation2 [shape = 'f32[8,256]{1,0:T(8,128)}', space=vmem, size = 0x2000, scoped, tag = 'scratch operand']
  %s0 = inlined_call_operand.hbm [shape: f32[8,128], index: 0, kind: input, shape index: {}]
  %s1 = inlined_call_operand.hbm [shape: f32[128,256], index: 1, kind: input, shape index: {}]
  %s2 = inlined_call_operand.vmem [shape: f32[1,256], index: 2, kind: input, shape index: {}]
  %s3 = inlined_call_operand.hbm [shape: f32[8,128], index: 3, kind: output, shape index: {}]
  %s4 = sld [smem:[#allocation0]]
  $region38: #{tpu_custom_call.1} parent=0
    _
  %s6 = ssub.s32 1, %s4
  %s7 = scalar_select 0, %s6, %s4
  $region1: #{tpu_custom_call.1} parent=0
    #allocation3 [shape = 'u8[4096]{0}', space=vmem, size = 0x1000, scoped, tag = 'input window, operand 0, single buffered']
    #allocation4 [shape = 's32[1]{0}', space=sflag, size = 0x4, scoped, tag = 'scoped memory for tpu_custom_call.1']
    #allocation5 [shape = 's32[1]{0}', space=sflag, size = 0x4, scoped, tag = 'scoped memory for tpu_custom_call.1']
    #allocation6 [shape = 'u8[131072]{0}', space=vmem, size = 0x20000, scoped, tag = 'input window, operand 1, single buffered']
    #allocation7 [shape = 's32[1]{0}', space=sflag, size = 0x4, scoped, tag = 'scoped memory for tpu_custom_call.1']
    #allocation8 [shape = 'u8[4096]{0}', space=vmem, size = 0x1000, scoped, tag = 'output window, operand 0, single buffered']
    %8 = vsyncpa [#allocation4], 0
    %9 = vsyncpa [#allocation7], 0
    %10 = vsyncpa [#allocation5], 0
    // Predicated region
    $region2: #{tpu_custom_call.1} parent=1 // pred_check
      _
    $region3: #{tpu_custom_call.1} parent=1 // pred_check_branch
      %12 = sbr.rel (0) target = $region5
    $region4: #{tpu_custom_call.1} parent=1 // pred_region
      %s14 = ssub.s32 128, 128
      %15 = vsyncadd [#allocation4], %s14
      %s17 = sshll.u32 [#allocation3], 4
      %s18 = int_to_ptr.vmem [resolvable:$true] %s17
      %20 = dma.hbm_to_vmem [thread:$0]  %s0, 128, %s18, [#allocation4]
    $region5: #{tpu_custom_call.1} parent=1 // pred_fallthru
      _
    // Predicated region
    $region6: #{tpu_custom_call.1} parent=1 // pred_check
      _
    $region7: #{tpu_custom_call.1} parent=1 // pred_check_branch
      %22 = sbr.rel (0) target = $region9
    $region8: #{tpu_custom_call.1} parent=1 // pred_region
      %s24 = ssub.s32 4096, 4096
      %25 = vsyncadd [#allocation7], %s24
      %s26 = sshll.u32 [#allocation6], 4
      %s27 = int_to_ptr.vmem [resolvable:$true] %s26
      %32 = dma.hbm_to_vmem [thread:$0]  %s1, 4096, %s27, [#allocation7], 256, 256, 16
    $region9: #{tpu_custom_call.1} parent=1 // pred_fallthru
      _
    // Predicated region
    $region10: #{tpu_custom_call.1} parent=1 // pred_check
      _
    $region11: #{tpu_custom_call.1} parent=1 // pred_check_branch
      %34 = sbr.rel (0) target = $region13
    $region12: #{tpu_custom_call.1} parent=1 // pred_region
      _
    $region13: #{tpu_custom_call.1} parent=1 // pred_fallthru
      _
    // Predicated region
    $region14: #{tpu_custom_call.1} parent=1 // pred_check
      _
    $region15: #{tpu_custom_call.1} parent=1 // pred_check_branch
      %36 = sbr.rel (0) target = $region17
    $region16: #{tpu_custom_call.1} parent=1 // pred_region
      %37 = dma.done [#allocation4], 128
    $region17: #{tpu_custom_call.1} parent=1 // pred_fallthru
      _
    // Predicated region
    $region18: #{tpu_custom_call.1} parent=1 // pred_check
      _
    $region19: #{tpu_custom_call.1} parent=1 // pred_check_branch
      %39 = sbr.rel (0) target = $region21
    $region20: #{tpu_custom_call.1} parent=1 // pred_region
      %40 = dma.done [#allocation7], 4096
    $region21: #{tpu_custom_call.1} parent=1 // pred_fallthru
      _
    %p41 = scmp.eq.s32.totalorder 0, 0
    // Predicated region
    $region22: #{tpu_custom_call.1} parent=1 // pred_check
      %p42 = pneg %p41
    $region23: #{tpu_custom_call.1} parent=1 // pred_check_branch
      %44 = sbr.rel (%p42) target = $region25
    $region24: #{tpu_custom_call.1} parent=1 // pred_region
      %v45 = vld [vmem:[%s2] sm:$0x3]
      %v47 = vlaneseq
      %v48 = vshrl.u32 %v47, 7
      %v49 = vsub.s32 0, %v48
      %v50 = vrot.slane %v45, %v49
      %v51 = vlaneseq
      %v52 = vshrl.u32 %v51, 7
      %v53 = vsub.s32 1, %v52
      %v54 = vrot.slane %v45, %v53
      %57 = vst [vmem:[#allocation2] sm:$0xff] %v50
      %58 = vst [vmem:[#allocation2 + $0x8] sm:$0xff] %v54
    $region25: #{tpu_custom_call.1} parent=1 // pred_fallthru
      _
    %v59 = vld [vmem:[#allocation2] sm:$0xff]
    %v60 = vld [vmem:[#allocation2 + $0x8] sm:$0xff]
    %v61 = vld [vmem:[#allocation3] sm:$0xff]
    %v62 = vld [vmem:[#allocation6] sm:$0xff]
    %v63 = vld [vmem:[#allocation6 + $0x8] sm:$0xff]
    %v64 = vld [vmem:[#allocation6 + $0x10] sm:$0xff]
    %v65 = vld [vmem:[#allocation6 + $0x18] sm:$0xff]
    %v66 = vld [vmem:[#allocation6 + $0x20] sm:$0xff]
    %v67 = vld [vmem:[#allocation6 + $0x28] sm:$0xff]
    %v68 = vld [vmem:[#allocation6 + $0x30] sm:$0xff]
    %v69 = vld [vmem:[#allocation6 + $0x38] sm:$0xff]
    %v70 = vld [vmem:[#allocation6 + $0x40] sm:$0xff]
    %v71 = vld [vmem:[#allocation6 + $0x48] sm:$0xff]
    %v72 = vld [vmem:[#allocation6 + $0x50] sm:$0xff]
    %v73 = vld [vmem:[#allocation6 + $0x58] sm:$0xff]
    %v74 = vld [vmem:[#allocation6 + $0x60] sm:$0xff]
    %v75 = vld [vmem:[#allocation6 + $0x68] sm:$0xff]
    %v76 = vld [vmem:[#allocation6 + $0x70] sm:$0xff]
    %v77 = vld [vmem:[#allocation6 + $0x78] sm:$0xff]
    %v78 = vld [vmem:[#allocation6 + $0x80] sm:$0xff]
    %v79 = vld [vmem:[#allocation6 + $0x88] sm:$0xff]
    %v80 = vld [vmem:[#allocation6 + $0x90] sm:$0xff]
    %v81 = vld [vmem:[#allocation6 + $0x98] sm:$0xff]
    %v82 = vld [vmem:[#allocation6 + $0xa0] sm:$0xff]
    %v83 = vld [vmem:[#allocation6 + $0xa8] sm:$0xff]
    %v84 = vld [vmem:[#allocation6 + $0xb0] sm:$0xff]
    %v85 = vld [vmem:[#allocation6 + $0xb8] sm:$0xff]
    %v86 = vld [vmem:[#allocation6 + $0xc0] sm:$0xff]
    %v87 = vld [vmem:[#allocation6 + $0xc8] sm:$0xff]
    %v88 = vld [vmem:[#allocation6 + $0xd0] sm:$0xff]
    %v89 = vld [vmem:[#allocation6 + $0xd8] sm:$0xff]
    %v90 = vld [vmem:[#allocation6 + $0xe0] sm:$0xff]
    %v91 = vld [vmem:[#allocation6 + $0xe8] sm:$0xff]
    %v92 = vld [vmem:[#allocation6 + $0xf0] sm:$0xff]
    %v93 = vld [vmem:[#allocation6 + $0xf8] sm:$0xff]
    %94 = vmatprep.subr.mxu0 %v63
    %95 = vmatpush1.msra.mxu0 %v62
    %96 = vmatprep.subr.mxu0 %v65
    %97 = vmatpush1.msra.mxu0 %v64
    %98 = vmatprep.subr.mxu0 %v67
    %99 = vmatpush1.msra.mxu0 %v66
    %100 = vmatprep.subr.mxu0 %v69
    %101 = vmatpush1.msra.mxu0 %v68
    %102 = vmatprep.subr.mxu0 %v71
    %103 = vmatpush1.msra.mxu0 %v70
    %104 = vmatprep.subr.mxu0 %v73
    %105 = vmatpush1.msra.mxu0 %v72
    %106 = vmatprep.subr.mxu0 %v75
    %107 = vmatpush1.msra.mxu0 %v74
    %108 = vmatprep.subr.mxu0 %v77
    %109 = vmatpush1.msra.mxu0 %v76
    %110 = vmatprep.subr.mxu0 %v79
    %111 = vmatpush1.msra.mxu0 %v78
    %112 = vmatprep.subr.mxu0 %v81
    %113 = vmatpush1.msra.mxu0 %v80
    %114 = vmatprep.subr.mxu0 %v83
    %115 = vmatpush1.msra.mxu0 %v82
    %116 = vmatprep.subr.mxu0 %v85
    %117 = vmatpush1.msra.mxu0 %v84
    %118 = vmatprep.subr.mxu0 %v87
    %119 = vmatpush1.msra.mxu0 %v86
    %120 = vmatprep.subr.mxu0 %v89
    %121 = vmatpush1.msra.mxu0 %v88
    %122 = vmatprep.subr.mxu0 %v91
    %123 = vmatpush1.msra.mxu0 %v90
    %124 = vmatprep.subr.mxu0 %v93
    %125 = vmatpush1.msra.mxu0 %v92
    %126 = vmatprep.subr.mxu0 0.0
    %127 = vmatpush1.msra.mxu0 0.0
    %128 = vmatprep.subr.mxu0 0.0
    %129 = vmatpush1.msra.mxu0 0.0
    %130 = vmatprep.subr.mxu0 0.0
    %131 = vmatpush1.msra.mxu0 0.0
    %132 = vmatprep.subr.mxu0 0.0
    %133 = vmatpush1.msra.mxu0 0.0
    %134 = vmatprep.subr.mxu0 0.0
    %135 = vmatpush1.msra.mxu0 0.0
    %136 = vmatprep.subr.mxu0 0.0
    %137 = vmatpush1.msra.mxu0 0.0
    %138 = vmatprep.subr.mxu0 0.0
    %139 = vmatpush1.msra.mxu0 0.0
    %140 = vmatprep.subr.mxu0 0.0
    %141 = vmatpush1.msra.mxu0 0.0
    %142 = vmatprep.subr.mxu0 0.0
    %143 = vmatpush1.msra.mxu0 0.0
    %144 = vmatprep.subr.mxu0 0.0
    %145 = vmatpush1.msra.mxu0 0.0
    %146 = vmatprep.subr.mxu0 0.0
    %147 = vmatpush1.msra.mxu0 0.0
    %148 = vmatprep.subr.mxu0 0.0
    %149 = vmatpush1.msra.mxu0 0.0
    %150 = vmatprep.subr.mxu0 0.0
    %151 = vmatpush1.msra.mxu0 0.0
    %152 = vmatprep.subr.mxu0 0.0
    %153 = vmatpush1.msra.mxu0 0.0
    %154 = vmatprep.subr.mxu0 0.0
    %155 = vmatpush1.msra.mxu0 0.0
    %156 = vmatprep.subr.mxu0 0.0
    %157 = vmatpush1.msra.mxu0 0.0
    %158 = vmatprep.mubr.f32.mxu0 0.0
    %159 = vmatmul.mubr.f32.gmra.mrb[0].mxu0 %v61
    %v160 = vpop.f32.mrb[0].mxu0
    %v161 = vadd.f32 0.0, %v160
    %v162 = vpop.f32.mrb[0].mxu0
    %v163 = vadd.f32 0.0, %v162
    %164 = vdwg.mxu0
    %v165 = vadd.f32 %v59, %v161
    %v166 = vadd.f32 %v60, %v163
    %167 = vst [vmem:[#allocation2] sm:$0xff] %v165
    %168 = vst [vmem:[#allocation2 + $0x8] sm:$0xff] %v166
    // Predicated region
    $region26: #{tpu_custom_call.1} parent=1 // pred_check
      %p169 = pneg %p41
    $region27: #{tpu_custom_call.1} parent=1 // pred_check_branch
      %171 = sbr.rel (%p169) target = $region29
    $region28: #{tpu_custom_call.1} parent=1 // pred_region
      %v172 = vld [vmem:[#allocation2] sm:$0xff]
      %v173 = vld [vmem:[#allocation2 + $0x8] sm:$0xff]
      %v174 = vxor.u32 %v173, 2147483648
      %v175 = vmul.f32 %v174, 1.442695
      %v176 = vpow.pop %v175
      %v177 = vadd.f32 %v176, 1.0
      %v178 = vrcp.pop %v177
      %v179 = vmul.f32 1.0, %v178
      %v180 = vmul.f32 %v172, %v179
      %181 = vst [vmem:[#allocation8] sm:$0xff] %v180
    $region29: #{tpu_custom_call.1} parent=1 // pred_fallthru
      _
    // Predicated region
    $region30: #{tpu_custom_call.1} parent=1 // pred_check
      _
    $region31: #{tpu_custom_call.1} parent=1 // pred_check_branch
      %183 = sbr.rel (0) target = $region33
    $region32: #{tpu_custom_call.1} parent=1 // pred_region
      %s185 = ssub.s32 128, 128
      %186 = vsyncadd [#allocation5], %s185
      %s188 = sshll.u32 [#allocation8], 4
      %s189 = int_to_ptr.vmem [resolvable:$true] %s188
      %191 = dma.vmem_to_hbm [thread:$0]  %s189, 128, %s3, [#allocation5]
    $region33: #{tpu_custom_call.1} parent=1 // pred_fallthru
      _
    // Predicated region
    $region34: #{tpu_custom_call.1} parent=1 // pred_check
      _
    $region35: #{tpu_custom_call.1} parent=1 // pred_check_branch
      %193 = sbr.rel (0) target = $region37
    $region36: #{tpu_custom_call.1} parent=1 // pred_region
      %194 = dma.done [#allocation5], 128
    $region37: #{tpu_custom_call.1} parent=1 // pred_fallthru
      _
    %195 = vsyncpa [#allocation4], 1
    %196 = vsyncpa [#allocation7], 1
    %197 = vsyncpa [#allocation5], 1

</llo_original>
